<compile_context>
chip_gen: v7x
topology: tpu7x:2x2x1
jax: 0.10.0
libtpu: 0.0.40
codegen_flags: <defaults>
</compile_context>

<pallas_src>
import math
import jax
import jax.numpy as jnp
from jax.experimental import pallas as pl
from jax.experimental.pallas import tpu as pltpu


# ------------------------------ batch tiling helper ------------------------------
def _pick_batch_tile(B, max_tile=8):
    # Prefer a tile that leaves >= 2 grid blocks (keeps both TensorCores busy on v7x);
    # otherwise fall back to a single block covering the whole batch.
    for bt in (max_tile, 4, 2, 1):
        if bt <= B and B % bt == 0 and B // bt >= 2:
            return bt
    return B


# ------------------------------ fused forward kernel ------------------------------
def _make_fused_kernel(num_layers):
    def kernel(*refs):
        a_ref, x0_ref = refs[0], refs[1]
        layer_refs = refs[2:2 + 2 * num_layers]
        wl_ref, bl_ref, wr_ref, br_ref, o_ref = refs[2 + 2 * num_layers:]

        a = a_ref[...]            # (Bt, N, N)
        x0 = x0_ref[...]          # (Bt, N, Din)
        bt, n, _ = a.shape

        # ---- GCN stack: y = (A @ x1) @ W + b ; x1 = relu(y) - 2/(y^2 + 1) ----
        x1 = x0
        for li in range(num_layers):
            w = layer_refs[2 * li][...]        # (Din_l, Dout_l)
            b = layer_refs[2 * li + 1][...]    # (1, Dout_l)
            din, dout = w.shape
            ax = jnp.einsum("bnm,bmd->bnd", a, x1,
                            preferred_element_type=jnp.float32)           # (Bt, N, Din_l)
            # fold batch into M for the weight matmul: (Bt*N, Din) @ (Din, Dout)
            y = jnp.dot(ax.reshape(bt * n, din), w,
                        preferred_element_type=jnp.float32) + b           # (Bt*N, Dout_l)
            act = jnp.maximum(y, 0.0) - 2.0 * pl.reciprocal(y * y + 1.0, approx=False)
            x1 = act.reshape(bt, n, dout)

        # ---- QGCN last layer (reassociated; no materialized transposes) ----
        #   r = x1 @ wl                 (Bt, N)     lane reduction
        #   s = r^T A + bl              (Bt, 1, N)  == (A^T x1 wl + bl)^T
        #   u = s @ x0                  (Bt, 1, DR)
        #   out = u @ wr + br           (Bt, out)
        wl_row = wl_ref[...]                                   # (1, DL)
        rr = jnp.sum(x1 * wl_row, axis=-1)                     # (Bt, N)
        r_row = rr.reshape(bt, 1, n)                           # (Bt, 1, N)
        s_row = jnp.einsum("bon,bnm->bom", r_row, a,
                           preferred_element_type=jnp.float32) + bl_ref[...]  # (Bt, 1, N)
        u = jnp.einsum("bom,bmd->bod", s_row, x0,
                       preferred_element_type=jnp.float32)     # (Bt, 1, DR)
        dr = u.shape[-1]
        out = jnp.dot(u.reshape(bt, dr), wr_ref[...],
                      preferred_element_type=jnp.float32) + br_ref[...]       # (Bt, out)
        o_ref[...] = out.reshape(bt, 1, -1)

    return kernel


def qgcn_forward(A, x0, params):
    """Fused QGCN forward (f='x1_x0', no embeddings, eval-mode dropout) in ONE pallas_call."""
    B, N, _ = A.shape
    Din = x0.shape[-1]
    gcn_params = params["gcn"]
    wl, bl, wr, br = params["last"]
    out_dim = wr.shape[-1]
    num_layers = len(gcn_params)
    bt = _pick_batch_tile(B)

    # present wl as a (1, DL) row so the in-kernel broadcast is along lanes
    wl_row = wl.reshape(1, wl.shape[0])

    in_specs = [
        pl.BlockSpec((bt, N, N), lambda i: (i, 0, 0)),
        pl.BlockSpec((bt, N, Din), lambda i: (i, 0, 0)),
    ]
    flat_params = []
    for (w, b) in gcn_params:
        in_specs.append(pl.BlockSpec(w.shape, lambda i: (0, 0)))
        in_specs.append(pl.BlockSpec(b.shape, lambda i: (0, 0)))
        flat_params += [w, b]
    for p in (wl_row, bl, wr, br):
        in_specs.append(pl.BlockSpec(p.shape, lambda i: (0, 0)))
        flat_params.append(p)

    out = pl.pallas_call(
        _make_fused_kernel(num_layers),
        out_shape=jax.ShapeDtypeStruct((B, 1, out_dim), jnp.float32),
        grid=(B // bt,),
        in_specs=in_specs,
        out_specs=pl.BlockSpec((bt, 1, out_dim), lambda i: (i, 0, 0)),
        compiler_params=pltpu.CompilerParams(dimension_semantics=("parallel",)),
    )(A, x0, *flat_params)
    return jnp.squeeze(out, axis=1)  # squeeze(dim=1) as in torch


# ------------------------------ parameter init ------------------------------
def _uniform(key, shape, a, b):
    return jax.random.uniform(key, shape, dtype=jnp.float32, minval=a, maxval=b)


def init_params(key, in_dim, layer_dims, out_dim):
    """Deterministic init mirroring the module's reset_parameters (uniform +-1/sqrt(fan))."""
    params = {"gcn": [], "last": None}
    dims = [in_dim] + layer_dims
    for i in range(len(layer_dims)):
        key, kw, kb = jax.random.split(key, 3)
        din, dout = dims[i], dims[i + 1]
        stdv = 1.0 / math.sqrt(dout)                       # GCN.reset_parameters
        w = _uniform(kw, (din, dout), -stdv, stdv)         # stored as (Din, Dout) = W^T
        b_std = 1.0 / math.sqrt(din)                       # default Linear bias init
        b = _uniform(kb, (1, dout), -b_std, b_std)
        params["gcn"].append((w, b))
    left_in = layer_dims[-1]
    right_in = in_dim
    key, k1, k2, k3, k4 = jax.random.split(key, 5)
    wl = _uniform(k1, (left_in, 1), -1.0, 1.0)             # stdv = 1/sqrt(1)
    bl = _uniform(k2, (1, 1), -1.0 / math.sqrt(left_in), 1.0 / math.sqrt(left_in))
    stdv_r = 1.0 / math.sqrt(out_dim)
    wr = _uniform(k3, (right_in, out_dim), -stdv_r, stdv_r)
    br = _uniform(k4, (1, out_dim), -1.0 / math.sqrt(right_in), 1.0 / math.sqrt(right_in))
    params["last"] = (wl, bl, wr, br)
    return params


# ------------------------------ pure-JAX reference ------------------------------
def qgcn_reference(A, x0, params):
    """Follows the original torch association exactly (validates the reassociated kernel)."""
    x1 = x0
    for (w, b) in params["gcn"]:
        y = jnp.einsum("bnm,bmd->bnd", A, x1) @ w + b
        x1 = jnp.maximum(y, 0.0) - 2.0 / (y * y + 1.0)
    wl, bl, wr, br = params["last"]
    x1_A = jnp.einsum("bnd,bnm->bdm", x1, A)                      # x1^T @ A
    W2 = jnp.einsum("bdm,do->bmo", x1_A, wl) + bl                 # (B, N, 1)
    W2x0 = jnp.einsum("bmo,bmr->bor", W2, x0)                     # (B, 1, DR)
    out = W2x0 @ wr + br                                          # (B, 1, out)
    return jnp.squeeze(out, axis=1)


if __name__ == "__main__":
    # Small config implied by the module: 2 GCN layers, f='x1_x0', binary -> out_dim=1.
    B, N, in_dim = 2, 16, 8
    layer_dims = [32, 16]
    out_dim = 1

    key = jax.random.PRNGKey(0)
    key, ka, kx = jax.random.split(key, 3)
    A = jax.random.uniform(ka, (B, N, N), dtype=jnp.float32)      # dense adjacency-like input
    x0 = jax.random.normal(kx, (B, N, in_dim), dtype=jnp.float32)
    params = init_params(key, in_dim, layer_dims, out_dim)

    out = jax.block_until_ready(qgcn_forward(A, x0, params))
    ref = jax.block_until_ready(qgcn_reference(A, x0, params))
    assert out.shape == (B, out_dim), out.shape
    assert jnp.allclose(out, ref, atol=1e-4, rtol=1e-4), (out, ref)

    # TODO(synk): Embedding lookups and dropout masks are not kernelized — the chosen
    # config (use_embeddings='False', eval-mode dropout) makes them no-ops.
    print("KERNEL_OK")
</pallas_src>

<mosaic_0001>
module attributes {stable_mosaic.version = 11 : i64} {
  func.func @kernel(%arg0: i32, %arg1: memref<1x16x16xf32, #tpu.memory_space<vmem>>, %arg2: memref<1x16x8xf32, #tpu.memory_space<vmem>>, %arg3: memref<8x32xf32, #tpu.memory_space<vmem>>, %arg4: memref<1x32xf32, #tpu.memory_space<vmem>>, %arg5: memref<32x16xf32, #tpu.memory_space<vmem>>, %arg6: memref<1x16xf32, #tpu.memory_space<vmem>>, %arg7: memref<1x16xf32, #tpu.memory_space<vmem>>, %arg8: memref<1x1xf32, #tpu.memory_space<vmem>>, %arg9: memref<8x1xf32, #tpu.memory_space<vmem>>, %arg10: memref<1x1xf32, #tpu.memory_space<vmem>>, %arg11: memref<1x1x1xf32, #tpu.memory_space<vmem>>) attributes {dimension_semantics = [#tpu.dimension_semantics<parallel>], iteration_bounds = array<i64: 2>, scalar_prefetch = 0 : i64, scratch_operands = 0 : i64, tpu.core_type = #tpu.core_type<tc>, window_params = [{transform_indices = @transform_0, window_bounds = array<i64: 1, 16, 16>}, {transform_indices = @transform_1, window_bounds = array<i64: 1, 16, 8>}, {pipeline_mode = #tpu.pipeline_mode<synchronous>, transform_indices = @transform_2, window_bounds = array<i64: 8, 32>}, {pipeline_mode = #tpu.pipeline_mode<synchronous>, transform_indices = @transform_3, window_bounds = array<i64: 1, 32>}, {pipeline_mode = #tpu.pipeline_mode<synchronous>, transform_indices = @transform_4, window_bounds = array<i64: 32, 16>}, {pipeline_mode = #tpu.pipeline_mode<synchronous>, transform_indices = @transform_5, window_bounds = array<i64: 1, 16>}, {pipeline_mode = #tpu.pipeline_mode<synchronous>, transform_indices = @transform_6, window_bounds = array<i64: 1, 16>}, {pipeline_mode = #tpu.pipeline_mode<synchronous>, transform_indices = @transform_7, window_bounds = array<i64: 1, 1>}, {pipeline_mode = #tpu.pipeline_mode<synchronous>, transform_indices = @transform_8, window_bounds = array<i64: 8, 1>}, {pipeline_mode = #tpu.pipeline_mode<synchronous>, transform_indices = @transform_9, window_bounds = array<i64: 1, 1>}, {transform_indices = @transform_10, window_bounds = array<i64: 1, 1, 1>}]} {
    %c0 = arith.constant 0 : index
    %c0_0 = arith.constant 0 : index
    %c0_1 = arith.constant 0 : index
    %0 = vector.load %arg1[%c0, %c0_0, %c0_1] : memref<1x16x16xf32, #tpu.memory_space<vmem>>, vector<1x16x16xf32>
    %c0_2 = arith.constant 0 : index
    %c0_3 = arith.constant 0 : index
    %c0_4 = arith.constant 0 : index
    %1 = vector.load %arg2[%c0_2, %c0_3, %c0_4] : memref<1x16x8xf32, #tpu.memory_space<vmem>>, vector<1x16x8xf32>
    %c0_5 = arith.constant 0 : index
    %c0_6 = arith.constant 0 : index
    %2 = vector.load %arg3[%c0_5, %c0_6] : memref<8x32xf32, #tpu.memory_space<vmem>>, vector<8x32xf32>
    %c0_7 = arith.constant 0 : index
    %c0_8 = arith.constant 0 : index
    %3 = vector.load %arg4[%c0_7, %c0_8] : memref<1x32xf32, #tpu.memory_space<vmem>>, vector<1x32xf32>
    "tpu.trace_start"() <{level = 10 : i32, message = "bnm,bmd->bnd"}> : () -> ()
    %cst = arith.constant dense<0.000000e+00> : vector<1x16x8xf32>
    %4 = tpu.matmul %0, %1, %cst {dimension_numbers = #tpu.dot_dimension_numbers<[2], [1], [1], [2], [0, 0, 0, 1, 1, 2], [0], [0]>} : vector<1x16x16xf32>, vector<1x16x8xf32>, vector<1x16x8xf32> -> vector<1x16x8xf32>
    "tpu.trace_stop"() : () -> ()
    %5 = vector.shape_cast %4 : vector<1x16x8xf32> to vector<16x8xf32>
    %cst_9 = arith.constant dense<0.000000e+00> : vector<16x32xf32>
    %6 = tpu.matmul %5, %2, %cst_9 {dimension_numbers = #tpu.dot_dimension_numbers<[1], [0], [0], [1], [0, 0, 1, 1], [], []>} : vector<16x8xf32>, vector<8x32xf32>, vector<16x32xf32> -> vector<16x32xf32>
    %7 = vector.broadcast %3 : vector<1x32xf32> to vector<16x32xf32>
    %8 = arith.addf %6, %7 : vector<16x32xf32>
    %cst_10 = arith.constant 0.000000e+00 : f32
    %9 = vector.broadcast %cst_10 : f32 to vector<16x32xf32>
    %10 = arith.maximumf %8, %9 : vector<16x32xf32>
    %11 = arith.mulf %8, %8 : vector<16x32xf32>
    %cst_11 = arith.constant 1.000000e+00 : f32
    %12 = vector.broadcast %cst_11 : f32 to vector<16x32xf32>
    %13 = arith.addf %11, %12 : vector<16x32xf32>
    %14 = tpu.reciprocal %13 : vector<16x32xf32> -> vector<16x32xf32>
    %cst_12 = arith.constant 2.000000e+00 : f32
    %15 = vector.broadcast %cst_12 : f32 to vector<16x32xf32>
    %16 = arith.mulf %15, %14 : vector<16x32xf32>
    %17 = arith.subf %10, %16 : vector<16x32xf32>
    %18 = vector.shape_cast %17 : vector<16x32xf32> to vector<1x16x32xf32>
    %c0_13 = arith.constant 0 : index
    %c0_14 = arith.constant 0 : index
    %19 = vector.load %arg5[%c0_13, %c0_14] : memref<32x16xf32, #tpu.memory_space<vmem>>, vector<32x16xf32>
    %c0_15 = arith.constant 0 : index
    %c0_16 = arith.constant 0 : index
    %20 = vector.load %arg6[%c0_15, %c0_16] : memref<1x16xf32, #tpu.memory_space<vmem>>, vector<1x16xf32>
    "tpu.trace_start"() <{level = 10 : i32, message = "bnm,bmd->bnd"}> : () -> ()
    %cst_17 = arith.constant dense<0.000000e+00> : vector<1x16x32xf32>
    %21 = tpu.matmul %0, %18, %cst_17 {dimension_numbers = #tpu.dot_dimension_numbers<[2], [1], [1], [2], [0, 0, 0, 1, 1, 2], [0], [0]>} : vector<1x16x16xf32>, vector<1x16x32xf32>, vector<1x16x32xf32> -> vector<1x16x32xf32>
    "tpu.trace_stop"() : () -> ()
    %22 = vector.shape_cast %21 : vector<1x16x32xf32> to vector<16x32xf32>
    %cst_18 = arith.constant dense<0.000000e+00> : vector<16x16xf32>
    %23 = tpu.matmul %22, %19, %cst_18 {dimension_numbers = #tpu.dot_dimension_numbers<[1], [0], [0], [1], [0, 0, 1, 1], [], []>} : vector<16x32xf32>, vector<32x16xf32>, vector<16x16xf32> -> vector<16x16xf32>
    %24 = vector.broadcast %20 : vector<1x16xf32> to vector<16x16xf32>
    %25 = arith.addf %23, %24 : vector<16x16xf32>
    %cst_19 = arith.constant 0.000000e+00 : f32
    %26 = vector.broadcast %cst_19 : f32 to vector<16x16xf32>
    %27 = arith.maximumf %25, %26 : vector<16x16xf32>
    %28 = arith.mulf %25, %25 : vector<16x16xf32>
    %cst_20 = arith.constant 1.000000e+00 : f32
    %29 = vector.broadcast %cst_20 : f32 to vector<16x16xf32>
    %30 = arith.addf %28, %29 : vector<16x16xf32>
    %31 = tpu.reciprocal %30 : vector<16x16xf32> -> vector<16x16xf32>
    %cst_21 = arith.constant 2.000000e+00 : f32
    %32 = vector.broadcast %cst_21 : f32 to vector<16x16xf32>
    %33 = arith.mulf %32, %31 : vector<16x16xf32>
    %34 = arith.subf %27, %33 : vector<16x16xf32>
    %35 = vector.shape_cast %34 : vector<16x16xf32> to vector<1x16x16xf32>
    %c0_22 = arith.constant 0 : index
    %c0_23 = arith.constant 0 : index
    %36 = vector.load %arg7[%c0_22, %c0_23] : memref<1x16xf32, #tpu.memory_space<vmem>>, vector<1x16xf32>
    %37 = vector.shape_cast %36 : vector<1x16xf32> to vector<1x1x16xf32>
    %38 = vector.broadcast %37 : vector<1x1x16xf32> to vector<1x16x16xf32>
    %39 = arith.mulf %35, %38 : vector<1x16x16xf32>
    %cst_24 = arith.constant dense<0.000000e+00> : vector<1x16xf32>
    %40 = vector.multi_reduction <add>, %39, %cst_24 [2] : vector<1x16x16xf32> to vector<1x16xf32>
    %41 = vector.shape_cast %40 : vector<1x16xf32> to vector<1x1x16xf32>
    "tpu.trace_start"() <{level = 10 : i32, message = "bon,bnm->bom"}> : () -> ()
    %cst_25 = arith.constant dense<0.000000e+00> : vector<1x1x16xf32>
    %42 = tpu.matmul %41, %0, %cst_25 {dimension_numbers = #tpu.dot_dimension_numbers<[2], [1], [1], [2], [0, 0, 0, 1, 1, 2], [0], [0]>} : vector<1x1x16xf32>, vector<1x16x16xf32>, vector<1x1x16xf32> -> vector<1x1x16xf32>
    "tpu.trace_stop"() : () -> ()
    %c0_26 = arith.constant 0 : index
    %c0_27 = arith.constant 0 : index
    %43 = vector.load %arg8[%c0_26, %c0_27] : memref<1x1xf32, #tpu.memory_space<vmem>>, vector<1x1xf32>
    %44 = vector.shape_cast %43 : vector<1x1xf32> to vector<1x1x1xf32>
    %45 = vector.broadcast %44 : vector<1x1x1xf32> to vector<1x1x16xf32>
    %46 = arith.addf %42, %45 : vector<1x1x16xf32>
    "tpu.trace_start"() <{level = 10 : i32, message = "bom,bmd->bod"}> : () -> ()
    %cst_28 = arith.constant dense<0.000000e+00> : vector<1x1x8xf32>
    %47 = tpu.matmul %46, %1, %cst_28 {dimension_numbers = #tpu.dot_dimension_numbers<[2], [1], [1], [2], [0, 0, 0, 1, 1, 2], [0], [0]>} : vector<1x1x16xf32>, vector<1x16x8xf32>, vector<1x1x8xf32> -> vector<1x1x8xf32>
    "tpu.trace_stop"() : () -> ()
    %48 = vector.shape_cast %47 : vector<1x1x8xf32> to vector<1x8xf32>
    %c0_29 = arith.constant 0 : index
    %c0_30 = arith.constant 0 : index
    %49 = vector.load %arg9[%c0_29, %c0_30] : memref<8x1xf32, #tpu.memory_space<vmem>>, vector<8x1xf32>
    %cst_31 = arith.constant dense<0.000000e+00> : vector<1x1xf32>
    %50 = tpu.matmul %48, %49, %cst_31 {dimension_numbers = #tpu.dot_dimension_numbers<[1], [0], [0], [1], [0, 0, 1, 1], [], []>} : vector<1x8xf32>, vector<8x1xf32>, vector<1x1xf32> -> vector<1x1xf32>
    %c0_32 = arith.constant 0 : index
    %c0_33 = arith.constant 0 : index
    %51 = vector.load %arg10[%c0_32, %c0_33] : memref<1x1xf32, #tpu.memory_space<vmem>>, vector<1x1xf32>
    %52 = arith.addf %50, %51 : vector<1x1xf32>
    %53 = vector.shape_cast %52 : vector<1x1xf32> to vector<1x1x1xf32>
    %c0_34 = arith.constant 0 : index
    %c0_35 = arith.constant 0 : index
    %c0_36 = arith.constant 0 : index
    %54 = vector.load %arg11[%c0_34, %c0_35, %c0_36] : memref<1x1x1xf32, #tpu.memory_space<vmem>>, vector<1x1x1xf32>
    tpu.vector_store %arg11[%c0_34, %c0_35, %c0_36], %53 {strides = array<i32>} : memref<1x1x1xf32, #tpu.memory_space<vmem>>, vector<1x1x1xf32>,
    return
  }
  func.func @transform_0(%arg0: i32) -> (i32, i32, i32) {
    %c0_i32 = arith.constant 0 : i32
    %c0_i32_0 = arith.constant 0 : i32
    %c0_i32_1 = arith.constant 0 : i32
    return %arg0, %c0_i32, %c0_i32_0 : i32, i32, i32
  }
  func.func @transform_1(%arg0: i32) -> (i32, i32, i32) {
    %c0_i32 = arith.constant 0 : i32
    %c0_i32_0 = arith.constant 0 : i32
    %c0_i32_1 = arith.constant 0 : i32
    return %arg0, %c0_i32, %c0_i32_0 : i32, i32, i32
  }
  func.func @transform_2(%arg0: i32) -> (i32, i32) {
    %c0_i32 = arith.constant 0 : i32
    %c0_i32_0 = arith.constant 0 : i32
    %c0_i32_1 = arith.constant 0 : i32
    return %c0_i32, %c0_i32_0 : i32, i32
  }
  func.func @transform_3(%arg0: i32) -> (i32, i32) {
    %c0_i32 = arith.constant 0 : i32
    %c0_i32_0 = arith.constant 0 : i32
    %c0_i32_1 = arith.constant 0 : i32
    return %c0_i32, %c0_i32_0 : i32, i32
  }
  func.func @transform_4(%arg0: i32) -> (i32, i32) {
    %c0_i32 = arith.constant 0 : i32
    %c0_i32_0 = arith.constant 0 : i32
    %c0_i32_1 = arith.constant 0 : i32
    return %c0_i32, %c0_i32_0 : i32, i32
  }
  func.func @transform_5(%arg0: i32) -> (i32, i32) {
    %c0_i32 = arith.constant 0 : i32
    %c0_i32_0 = arith.constant 0 : i32
    %c0_i32_1 = arith.constant 0 : i32
    return %c0_i32, %c0_i32_0 : i32, i32
  }
  func.func @transform_6(%arg0: i32) -> (i32, i32) {
    %c0_i32 = arith.constant 0 : i32
    %c0_i32_0 = arith.constant 0 : i32
    %c0_i32_1 = arith.constant 0 : i32
    return %c0_i32, %c0_i32_0 : i32, i32
  }
  func.func @transform_7(%arg0: i32) -> (i32, i32) {
    %c0_i32 = arith.constant 0 : i32
    %c0_i32_0 = arith.constant 0 : i32
    %c0_i32_1 = arith.constant 0 : i32
    return %c0_i32, %c0_i32_0 : i32, i32
  }
  func.func @transform_8(%arg0: i32) -> (i32, i32) {
    %c0_i32 = arith.constant 0 : i32
    %c0_i32_0 = arith.constant 0 : i32
    %c0_i32_1 = arith.constant 0 : i32
    return %c0_i32, %c0_i32_0 : i32, i32
  }
  func.func @transform_9(%arg0: i32) -> (i32, i32) {
    %c0_i32 = arith.constant 0 : i32
    %c0_i32_0 = arith.constant 0 : i32
    %c0_i32_1 = arith.constant 0 : i32
    return %c0_i32, %c0_i32_0 : i32, i32
  }
  func.func @transform_10(%arg0: i32) -> (i32, i32, i32) {
    %c0_i32 = arith.constant 0 : i32
    %c0_i32_0 = arith.constant 0 : i32
    %c0_i32_1 = arith.constant 0 : i32
    return %arg0, %c0_i32, %c0_i32_0 : i32, i32, i32
  }
}

</mosaic_0001>

<llo_original>
// kernel: tpu_custom_call.1
$region0: #{tpu_custom_call.1}
  #allocation0 [shape = 'u32[]', space=smem, size = 0x4, offset = 0x4, fixed_abs, tag = 'smem constant byte address 0x4 - core index']
  #allocation1 [shape = 'u32[144,128]{1,0:T(1,128)}', space=vmem, size = 0x12000, scoped, tag = 'internal scratch']
  #allocation2 [shape = 'f32[1,1]{1,0:T(1,128)S(1)}', space=vmem, size = 0x200, scoped, tag = 'scoped memory for tpu_custom_call.1']
  #allocation3 [shape = 'f32[1,1]{1,0:T(1,128)S(1)}', space=vmem, size = 0x200, scoped, tag = 'scoped memory for tpu_custom_call.1']
  %s0 = inlined_call_operand.vmem [shape: f32[2,16,16], index: 0, kind: input, shape index: {}]
  %s1 = inlined_call_operand.vmem [shape: f32[2,16,8], index: 1, kind: input, shape index: {}]
  %s2 = inlined_call_operand.vmem [shape: f32[8,32], index: 2, kind: input, shape index: {}]
  %s3 = inlined_call_operand.vmem [shape: f32[1,32], index: 3, kind: input, shape index: {}]
  %s4 = inlined_call_operand.vmem [shape: f32[32,16], index: 4, kind: input, shape index: {}]
  %s5 = inlined_call_operand.vmem [shape: f32[1,16], index: 5, kind: input, shape index: {}]
  %s6 = inlined_call_operand.vmem [shape: f32[1,16], index: 6, kind: input, shape index: {}]
  %s7 = inlined_call_operand.<no memory space> [shape: f32[1,1], index: 7, kind: input, shape index: {}]
  %s8 = inlined_call_operand.vmem [shape: f32[8,1], index: 8, kind: input, shape index: {}]
  %s9 = inlined_call_operand.<no memory space> [shape: f32[1,1], index: 9, kind: input, shape index: {}]
  %s10 = inlined_call_operand.vmem [shape: f32[2,1,1], index: 10, kind: output, shape index: {}]
  %s11 = sld [smem:[#allocation0]]
  $region73: #{tpu_custom_call.1} parent=0
    _
  %s13 = ssub.s32 1, %s11
  %s14 = scalar_select 0, %s13, %s11
  %v15 = vstv %s7
  %16 = vst [vmem:[#allocation2] sm:$0x1] %v15
  %v17 = vstv %s9
  %18 = vst [vmem:[#allocation3] sm:$0x1] %v17
  loop: start=0, step=1, limit=4
  $region2: #{tpu_custom_call.1} parent=0 // loop_pre_header
    _
  $region3: #{tpu_custom_call.1} parent=0 // loop_header
    %s20 = sphi 0, %s24
    %p21 = scmp.ge.s32.totalorder %s20, 4
    %s30 = sphi 0, %s32
    %s33 = sphi 0, %s30
    %s34 = sphi 0, %s33
    %s50 = sphi 0, %s34
    %s56 = sphi 0, %s58
    %s59 = sphi 0, %s56
    %s60 = sphi 0, %s59
    %s76 = sphi 0, %s60
    %s80 = sphi 0, %s80
    %s82 = sphi 0, %s80
    %s83 = sphi 0, %s82
    %s97 = sphi 0, %s83
    %s101 = sphi 0, %s101
    %s103 = sphi 0, %s101
    %s104 = sphi 0, %s103
    %s118 = sphi 0, %s104
    %s122 = sphi 0, %s122
    %s124 = sphi 0, %s122
    %s125 = sphi 0, %s124
    %s139 = sphi 0, %s125
    %s143 = sphi 0, %s143
    %s145 = sphi 0, %s143
    %s146 = sphi 0, %s145
    %s160 = sphi 0, %s146
    %s164 = sphi 0, %s164
    %s166 = sphi 0, %s164
    %s167 = sphi 0, %s166
    %s181 = sphi 0, %s167
    %s185 = sphi 0, %s185
    %s187 = sphi 0, %s185
    %s188 = sphi 0, %s187
    %s202 = sphi 0, %s188
    %s206 = sphi 0, %s206
    %s208 = sphi 0, %s206
    %s209 = sphi 0, %s208
    %s223 = sphi 0, %s209
    %s227 = sphi 0, %s227
    %s229 = sphi 0, %s227
    %s230 = sphi 0, %s229
    %s244 = sphi 0, %s230
    %s250 = sphi 0, %s252
    %s253 = sphi 0, %s250
    %s254 = sphi 0, %s253
    %s270 = sphi 0, %s254
  $region4: #{tpu_custom_call.1} parent=0 // loop_header_branch
    %23 = sbr.rel (%p21) target = $region8
  $region5: #{tpu_custom_call.1} parent=0 // loop_body
    %s25 = ssub.s32 %s20, 1
    %s26 = ssub.s32 %s20, 2
    %s27 = sadd.s32 %s20, 1
    %s28 = ssub.s32 %s20, %s27
    %p29 = scmp.eq.s32.totalorder %s28, 0
    %s31 = sadd.s32 %s30, 1
    %s32 = scalar_select %p29, %s30, %s31
    %p35 = pneg %p29
    %p36 = scmp.eq.s32.totalorder %s20, 1
    %p37 = por %p35, %p36
    %p38 = scmp.ne.s32.totalorder %s30, %s33
    %p39 = scmp.eq.s32.totalorder %s20, 0
    %p40 = por %p38, %p39
    %p41 = scmp.ne.s32.totalorder %s30, %s33
    %p42 = scmp.eq.s32.totalorder %s25, 1
    %p43 = por %p41, %p42
    %p44 = scmp.ne.s32.totalorder %s33, %s34
    %p45 = scmp.eq.s32.totalorder %s25, 0
    %p46 = por %p44, %p45
    %p47 = scmp.ne.s32.totalorder %s33, %s34
    %p48 = scmp.eq.s32.totalorder %s26, 1
    %p49 = por %p47, %p48
    %p51 = scmp.ne.s32.totalorder %s34, %s50
    %p52 = scmp.eq.s32.totalorder %s26, 0
    %p53 = por %p51, %p52
    %s54 = ssub.s32 %s20, %s27
    %p55 = scmp.eq.s32.totalorder %s54, 0
    %s57 = sadd.s32 %s56, 1
    %s58 = scalar_select %p55, %s56, %s57
    %p61 = pneg %p55
    %p62 = scmp.eq.s32.totalorder %s20, 1
    %p63 = por %p61, %p62
    %p64 = scmp.ne.s32.totalorder %s56, %s59
    %p65 = scmp.eq.s32.totalorder %s20, 0
    %p66 = por %p64, %p65
    %p67 = scmp.ne.s32.totalorder %s56, %s59
    %p68 = scmp.eq.s32.totalorder %s25, 1
    %p69 = por %p67, %p68
    %p70 = scmp.ne.s32.totalorder %s59, %s60
    %p71 = scmp.eq.s32.totalorder %s25, 0
    %p72 = por %p70, %p71
    %p73 = scmp.ne.s32.totalorder %s59, %s60
    %p74 = scmp.eq.s32.totalorder %s26, 1
    %p75 = por %p73, %p74
    %p77 = scmp.ne.s32.totalorder %s60, %s76
    %p78 = scmp.eq.s32.totalorder %s26, 0
    %p79 = por %p77, %p78
    %s81 = sadd.s32 %s80, 1
    %p84 = scmp.eq.s32.totalorder %s20, 1
    %p85 = scmp.ne.s32.totalorder %s80, %s82
    %p86 = scmp.eq.s32.totalorder %s20, 0
    %p87 = por %p85, %p86
    %p88 = scmp.ne.s32.totalorder %s80, %s82
    %p89 = scmp.eq.s32.totalorder %s25, 1
    %p90 = por %p88, %p89
    %p91 = scmp.ne.s32.totalorder %s82, %s83
    %p92 = scmp.eq.s32.totalorder %s25, 0
    %p93 = por %p91, %p92
    %p94 = scmp.ne.s32.totalorder %s82, %s83
    %p95 = scmp.eq.s32.totalorder %s26, 1
    %p96 = por %p94, %p95
    %p98 = scmp.ne.s32.totalorder %s83, %s97
    %p99 = scmp.eq.s32.totalorder %s26, 0
    %p100 = por %p98, %p99
    %s102 = sadd.s32 %s101, 1
    %p105 = scmp.eq.s32.totalorder %s20, 1
    %p106 = scmp.ne.s32.totalorder %s101, %s103
    %p107 = scmp.eq.s32.totalorder %s20, 0
    %p108 = por %p106, %p107
    %p109 = scmp.ne.s32.totalorder %s101, %s103
    %p110 = scmp.eq.s32.totalorder %s25, 1
    %p111 = por %p109, %p110
    %p112 = scmp.ne.s32.totalorder %s103, %s104
    %p113 = scmp.eq.s32.totalorder %s25, 0
    %p114 = por %p112, %p113
    %p115 = scmp.ne.s32.totalorder %s103, %s104
    %p116 = scmp.eq.s32.totalorder %s26, 1
    %p117 = por %p115, %p116
    %p119 = scmp.ne.s32.totalorder %s104, %s118
    %p120 = scmp.eq.s32.totalorder %s26, 0
    %p121 = por %p119, %p120
    %s123 = sadd.s32 %s122, 1
    %p126 = scmp.eq.s32.totalorder %s20, 1
    %p127 = scmp.ne.s32.totalorder %s122, %s124
    %p128 = scmp.eq.s32.totalorder %s20, 0
    %p129 = por %p127, %p128
    %p130 = scmp.ne.s32.totalorder %s122, %s124
    %p131 = scmp.eq.s32.totalorder %s25, 1
    %p132 = por %p130, %p131
    %p133 = scmp.ne.s32.totalorder %s124, %s125
    %p134 = scmp.eq.s32.totalorder %s25, 0
    %p135 = por %p133, %p134
    %p136 = scmp.ne.s32.totalorder %s124, %s125
    %p137 = scmp.eq.s32.totalorder %s26, 1
    %p138 = por %p136, %p137
    %p140 = scmp.ne.s32.totalorder %s125, %s139
    %p141 = scmp.eq.s32.totalorder %s26, 0
    %p142 = por %p140, %p141
    %s144 = sadd.s32 %s143, 1
    %p147 = scmp.eq.s32.totalorder %s20, 1
    %p148 = scmp.ne.s32.totalorder %s143, %s145
    %p149 = scmp.eq.s32.totalorder %s20, 0
    %p150 = por %p148, %p149
    %p151 = scmp.ne.s32.totalorder %s143, %s145
    %p152 = scmp.eq.s32.totalorder %s25, 1
    %p153 = por %p151, %p152
    %p154 = scmp.ne.s32.totalorder %s145, %s146
    %p155 = scmp.eq.s32.totalorder %s25, 0
    %p156 = por %p154, %p155
    %p157 = scmp.ne.s32.totalorder %s145, %s146
    %p158 = scmp.eq.s32.totalorder %s26, 1
    %p159 = por %p157, %p158
    %p161 = scmp.ne.s32.totalorder %s146, %s160
    %p162 = scmp.eq.s32.totalorder %s26, 0
    %p163 = por %p161, %p162
    %s165 = sadd.s32 %s164, 1
    %p168 = scmp.eq.s32.totalorder %s20, 1
    %p169 = scmp.ne.s32.totalorder %s164, %s166
    %p170 = scmp.eq.s32.totalorder %s20, 0
    %p171 = por %p169, %p170
    %p172 = scmp.ne.s32.totalorder %s164, %s166
    %p173 = scmp.eq.s32.totalorder %s25, 1
    %p174 = por %p172, %p173
    %p175 = scmp.ne.s32.totalorder %s166, %s167
    %p176 = scmp.eq.s32.totalorder %s25, 0
    %p177 = por %p175, %p176
    %p178 = scmp.ne.s32.totalorder %s166, %s167
    %p179 = scmp.eq.s32.totalorder %s26, 1
    %p180 = por %p178, %p179
    %p182 = scmp.ne.s32.totalorder %s167, %s181
    %p183 = scmp.eq.s32.totalorder %s26, 0
    %p184 = por %p182, %p183
    %s186 = sadd.s32 %s185, 1
    %p189 = scmp.eq.s32.totalorder %s20, 1
    %p190 = scmp.ne.s32.totalorder %s185, %s187
    %p191 = scmp.eq.s32.totalorder %s20, 0
    %p192 = por %p190, %p191
    %p193 = scmp.ne.s32.totalorder %s185, %s187
    %p194 = scmp.eq.s32.totalorder %s25, 1
    %p195 = por %p193, %p194
    %p196 = scmp.ne.s32.totalorder %s187, %s188
    %p197 = scmp.eq.s32.totalorder %s25, 0
    %p198 = por %p196, %p197
    %p199 = scmp.ne.s32.totalorder %s187, %s188
    %p200 = scmp.eq.s32.totalorder %s26, 1
    %p201 = por %p199, %p200
    %p203 = scmp.ne.s32.totalorder %s188, %s202
    %p204 = scmp.eq.s32.totalorder %s26, 0
    %p205 = por %p203, %p204
    %s207 = sadd.s32 %s206, 1
    %p210 = scmp.eq.s32.totalorder %s20, 1
    %p211 = scmp.ne.s32.totalorder %s206, %s208
    %p212 = scmp.eq.s32.totalorder %s20, 0
    %p213 = por %p211, %p212
    %p214 = scmp.ne.s32.totalorder %s206, %s208
    %p215 = scmp.eq.s32.totalorder %s25, 1
    %p216 = por %p214, %p215
    %p217 = scmp.ne.s32.totalorder %s208, %s209
    %p218 = scmp.eq.s32.totalorder %s25, 0
    %p219 = por %p217, %p218
    %p220 = scmp.ne.s32.totalorder %s208, %s209
    %p221 = scmp.eq.s32.totalorder %s26, 1
    %p222 = por %p220, %p221
    %p224 = scmp.ne.s32.totalorder %s209, %s223
    %p225 = scmp.eq.s32.totalorder %s26, 0
    %p226 = por %p224, %p225
    %s228 = sadd.s32 %s227, 1
    %p231 = scmp.eq.s32.totalorder %s20, 1
    %p232 = scmp.ne.s32.totalorder %s227, %s229
    %p233 = scmp.eq.s32.totalorder %s20, 0
    %p234 = por %p232, %p233
    %p235 = scmp.ne.s32.totalorder %s227, %s229
    %p236 = scmp.eq.s32.totalorder %s25, 1
    %p237 = por %p235, %p236
    %p238 = scmp.ne.s32.totalorder %s229, %s230
    %p239 = scmp.eq.s32.totalorder %s25, 0
    %p240 = por %p238, %p239
    %p241 = scmp.ne.s32.totalorder %s229, %s230
    %p242 = scmp.eq.s32.totalorder %s26, 1
    %p243 = por %p241, %p242
    %p245 = scmp.ne.s32.totalorder %s230, %s244
    %p246 = scmp.eq.s32.totalorder %s26, 0
    %p247 = por %p245, %p246
    %s248 = ssub.s32 %s20, %s27
    %p249 = scmp.eq.s32.totalorder %s248, 0
    %s251 = sadd.s32 %s250, 1
    %s252 = scalar_select %p249, %s250, %s251
    %p255 = pneg %p249
    %p256 = scmp.eq.s32.totalorder %s20, 1
    %p257 = por %p255, %p256
    %p258 = scmp.ne.s32.totalorder %s250, %s253
    %p259 = scmp.eq.s32.totalorder %s20, 0
    %p260 = por %p258, %p259
    %p261 = scmp.ne.s32.totalorder %s250, %s253
    %p262 = scmp.eq.s32.totalorder %s25, 1
    %p263 = por %p261, %p262
    %p264 = scmp.ne.s32.totalorder %s253, %s254
    %p265 = scmp.eq.s32.totalorder %s25, 0
    %p266 = por %p264, %p265
    %p267 = scmp.ne.s32.totalorder %s253, %s254
    %p268 = scmp.eq.s32.totalorder %s26, 1
    %p269 = por %p267, %p268
    %p271 = scmp.ne.s32.totalorder %s254, %s270
    %p272 = scmp.eq.s32.totalorder %s26, 0
    %p273 = por %p271, %p272
    %p274 = scmp.le.s32.totalorder 1, %s20
    %p275 = scmp.lt.s32.totalorder %s20, 3
    %p276 = pnand %p274, %p275
    %p277 = pneg %p276
    // Predicated region
    $region9: #{tpu_custom_call.1} parent=5 // pred_check
      _
    $region10: #{tpu_custom_call.1} parent=5 // pred_check_branch
      %279 = sbr.rel (%p276) target = $region12
    $region11: #{tpu_custom_call.1} parent=5 // pred_region
      %s280 = ssub.s32 %s20, 1
      // Predicated region
      $region13: #{tpu_custom_call.1} parent=11 // pred_check
        %p281 = pneg %p93
      $region14: #{tpu_custom_call.1} parent=11 // pred_check_branch
        %283 = sbr.rel (%p281) target = $region16
      $region15: #{tpu_custom_call.1} parent=11 // pred_region
        _
      $region16: #{tpu_custom_call.1} parent=11 // pred_fallthru
        _
      // Predicated region
      $region17: #{tpu_custom_call.1} parent=11 // pred_check
        %p284 = pneg %p114
      $region18: #{tpu_custom_call.1} parent=11 // pred_check_branch
        %286 = sbr.rel (%p284) target = $region20
      $region19: #{tpu_custom_call.1} parent=11 // pred_region
        _
      $region20: #{tpu_custom_call.1} parent=11 // pred_fallthru
        _
      // Predicated region
      $region21: #{tpu_custom_call.1} parent=11 // pred_check
        %p287 = pneg %p135
      $region22: #{tpu_custom_call.1} parent=11 // pred_check_branch
        %289 = sbr.rel (%p287) target = $region24
      $region23: #{tpu_custom_call.1} parent=11 // pred_region
        _
      $region24: #{tpu_custom_call.1} parent=11 // pred_fallthru
        _
      // Predicated region
      $region25: #{tpu_custom_call.1} parent=11 // pred_check
        %p290 = pneg %p156
      $region26: #{tpu_custom_call.1} parent=11 // pred_check_branch
        %292 = sbr.rel (%p290) target = $region28
      $region27: #{tpu_custom_call.1} parent=11 // pred_region
        _
      $region28: #{tpu_custom_call.1} parent=11 // pred_fallthru
        _
      // Predicated region
      $region29: #{tpu_custom_call.1} parent=11 // pred_check
        %p293 = pneg %p177
      $region30: #{tpu_custom_call.1} parent=11 // pred_check_branch
        %295 = sbr.rel (%p293) target = $region32
      $region31: #{tpu_custom_call.1} parent=11 // pred_region
        _
      $region32: #{tpu_custom_call.1} parent=11 // pred_fallthru
        _
      // Predicated region
      $region33: #{tpu_custom_call.1} parent=11 // pred_check
        %p296 = pneg %p198
      $region34: #{tpu_custom_call.1} parent=11 // pred_check_branch
        %298 = sbr.rel (%p296) target = $region36
      $region35: #{tpu_custom_call.1} parent=11 // pred_region
        _
      $region36: #{tpu_custom_call.1} parent=11 // pred_fallthru
        _
      // Predicated region
      $region37: #{tpu_custom_call.1} parent=11 // pred_check
        %p299 = pneg %p219
      $region38: #{tpu_custom_call.1} parent=11 // pred_check_branch
        %301 = sbr.rel (%p299) target = $region40
      $region39: #{tpu_custom_call.1} parent=11 // pred_region
        _
      $region40: #{tpu_custom_call.1} parent=11 // pred_fallthru
        _
      // Predicated region
      $region41: #{tpu_custom_call.1} parent=11 // pred_check
        %p302 = pneg %p240
      $region42: #{tpu_custom_call.1} parent=11 // pred_check_branch
        %304 = sbr.rel (%p302) target = $region44
      $region43: #{tpu_custom_call.1} parent=11 // pred_region
        _
      $region44: #{tpu_custom_call.1} parent=11 // pred_fallthru
        _
    $region12: #{tpu_custom_call.1} parent=5 // pred_fallthru
      _
    %p305 = scmp.lt.s32.totalorder %s20, 2
    // Predicated region
    $region45: #{tpu_custom_call.1} parent=5 // pred_check
      %p306 = pneg %p305
    $region46: #{tpu_custom_call.1} parent=5 // pred_check_branch
      %308 = sbr.rel (%p306) target = $region48
    $region47: #{tpu_custom_call.1} parent=5 // pred_region
      // Predicated region
      $region49: #{tpu_custom_call.1} parent=47 // pred_check
        %p309 = pneg %p40
      $region50: #{tpu_custom_call.1} parent=47 // pred_check_branch
        %311 = sbr.rel (%p309) target = $region52
      $region51: #{tpu_custom_call.1} parent=47 // pred_region
        %p312 = scmp.lt.s32.totalorder %s20, 1
        %s313 = scalar_select %p312, %s20, 1
        %s314 = smul.addr %s313, 2
        %s315 = smul.addr %s314, 8
        %s316 = scalar_lea.vmem %s0, %s315
      $region52: #{tpu_custom_call.1} parent=47 // pred_fallthru
        _
      // Predicated region
      $region53: #{tpu_custom_call.1} parent=47 // pred_check
        %p317 = pneg %p66
      $region54: #{tpu_custom_call.1} parent=47 // pred_check_branch
        %319 = sbr.rel (%p317) target = $region56
      $region55: #{tpu_custom_call.1} parent=47 // pred_region
        %p320 = scmp.lt.s32.totalorder %s20, 1
        %s321 = scalar_select %p320, %s20, 1
        %s322 = smul.addr %s321, 2
        %s323 = smul.addr %s322, 8
        %s324 = scalar_lea.vmem %s1, %s323
      $region56: #{tpu_custom_call.1} parent=47 // pred_fallthru
        _
    $region48: #{tpu_custom_call.1} parent=5 // pred_fallthru
      _
    %p325 = scmp.le.s32.totalorder 1, %s20
    %p326 = scmp.lt.s32.totalorder %s20, 3
    %p327 = pnand %p325, %p326
    %p328 = pneg %p327
    // Predicated region
    $region57: #{tpu_custom_call.1} parent=5 // pred_check
      _
    $region58: #{tpu_custom_call.1} parent=5 // pred_check_branch
      %330 = sbr.rel (%p327) target = $region60
    $region59: #{tpu_custom_call.1} parent=5 // pred_region
      %s331 = ssub.s32 %s20, 1
      %p332 = scmp.lt.s32.totalorder %s25, 1
      %s333 = scalar_select %p332, %s25, 1
      %s334 = smul.addr %s333, 2
      %s335 = smul.addr %s334, 8
      %s336 = scalar_lea.vmem %s0, %s335
      %p337 = pneg %p46
      %p338 = pneg %p43
      %p339 = scmp.lt.s32.totalorder %s25, 1
      %s340 = scalar_select %p339, %s25, 1
      %s341 = smul.addr %s340, 2
      %s342 = smul.addr %s341, 8
      %s343 = scalar_lea.vmem %s1, %s342
      %p344 = pneg %p72
      %p345 = pneg %p69
      %p346 = pneg %p93
      %p347 = pneg %p90
      %p348 = pneg %p114
      %p349 = pneg %p111
      %p350 = pneg %p135
      %p351 = pneg %p132
      %p352 = pneg %p156
      %p353 = pneg %p153
      %p354 = pneg %p177
      %p355 = pneg %p174
      %p356 = pneg %p198
      %p357 = pneg %p195
      %p358 = pneg %p219
      %p359 = pneg %p216
      %p360 = pneg %p240
      %p361 = pneg %p237
      %p362 = pneg %p266
      %p363 = pneg %p263
      %p364 = scmp.lt.s32.totalorder %s25, 1
      %s365 = scalar_select %p364, %s25, 1
      %s366 = scalar_lea.vmem %s10, %s365
      %p367 = scmp.lt.s32.totalorder %s25, 1
      %s368 = scalar_select %p367, %s25, 1
      %s369 = smul.addr %s368, 2
      %s370 = smul.addr %s369, 8
      %s371 = scalar_lea.vmem %s0, %s370
      %p372 = scmp.lt.s32.totalorder %s25, 1
      %s373 = scalar_select %p372, %s25, 1
      %s374 = smul.addr %s373, 2
      %s375 = smul.addr %s374, 8
      %s376 = scalar_lea.vmem %s1, %s375
      %p377 = scmp.lt.s32.totalorder %s25, 1
      %s378 = scalar_select %p377, %s25, 1
      %s379 = scalar_lea.vmem %s10, %s378
      %v380 = vld [vmem:[%s371] sm:$0xff]
      %v381 = vld [vmem:[%s371 + $0x8] sm:$0xff]
      %v382 = vld [vmem:[%s376] sm:$0xff]
      %v383 = vld [vmem:[%s376 + $0x8] sm:$0xff]
      %v384 = vld [vmem:[%s2] sm:$0xff]
      %v385 = vld [vmem:[%s3] sm:$0x1]
      %vm386 = vcmask 130048
      %v388 = vsel %vm386, %v380, 0
      %v391 = vsel %vm386, %v381, 0
      %393 = vmatprep.subr.mxu0 0.0
      %394 = vmatpush1.msra.mxu0 %v382
      %395 = vmatprep.subr.mxu0 0.0
      %396 = vmatpush1.msra.mxu0 %v383
      %397 = vmatprep.subr.mxu0 0.0
      %398 = vmatpush1.msra.mxu0 0.0
      %399 = vmatprep.subr.mxu0 0.0
      %400 = vmatpush1.msra.mxu0 0.0
      %401 = vmatprep.subr.mxu0 0.0
      %402 = vmatpush1.msra.mxu0 0.0
      %403 = vmatprep.subr.mxu0 0.0
      %404 = vmatpush1.msra.mxu0 0.0
      %405 = vmatprep.subr.mxu0 0.0
      %406 = vmatpush1.msra.mxu0 0.0
      %407 = vmatprep.subr.mxu0 0.0
      %408 = vmatpush1.msra.mxu0 0.0
      %409 = vmatprep.subr.mxu0 0.0
      %410 = vmatpush1.msra.mxu0 0.0
      %411 = vmatprep.subr.mxu0 0.0
      %412 = vmatpush1.msra.mxu0 0.0
      %413 = vmatprep.subr.mxu0 0.0
      %414 = vmatpush1.msra.mxu0 0.0
      %415 = vmatprep.subr.mxu0 0.0
      %416 = vmatpush1.msra.mxu0 0.0
      %417 = vmatprep.subr.mxu0 0.0
      %418 = vmatpush1.msra.mxu0 0.0
      %419 = vmatprep.subr.mxu0 0.0
      %420 = vmatpush1.msra.mxu0 0.0
      %421 = vmatprep.subr.mxu0 0.0
      %422 = vmatpush1.msra.mxu0 0.0
      %423 = vmatprep.subr.mxu0 0.0
      %424 = vmatpush1.msra.mxu0 0.0
      %425 = vmatprep.subr.mxu0 0.0
      %426 = vmatpush1.msra.mxu0 0.0
      %427 = vmatprep.subr.mxu0 0.0
      %428 = vmatpush1.msra.mxu0 0.0
      %429 = vmatprep.subr.mxu0 0.0
      %430 = vmatpush1.msra.mxu0 0.0
      %431 = vmatprep.subr.mxu0 0.0
      %432 = vmatpush1.msra.mxu0 0.0
      %433 = vmatprep.subr.mxu0 0.0
      %434 = vmatpush1.msra.mxu0 0.0
      %435 = vmatprep.subr.mxu0 0.0
      %436 = vmatpush1.msra.mxu0 0.0
      %437 = vmatprep.subr.mxu0 0.0
      %438 = vmatpush1.msra.mxu0 0.0
      %439 = vmatprep.subr.mxu0 0.0
      %440 = vmatpush1.msra.mxu0 0.0
      %441 = vmatprep.subr.mxu0 0.0
      %442 = vmatpush1.msra.mxu0 0.0
      %443 = vmatprep.subr.mxu0 0.0
      %444 = vmatpush1.msra.mxu0 0.0
      %445 = vmatprep.subr.mxu0 0.0
      %446 = vmatpush1.msra.mxu0 0.0
      %447 = vmatprep.subr.mxu0 0.0
      %448 = vmatpush1.msra.mxu0 0.0
      %449 = vmatprep.subr.mxu0 0.0
      %450 = vmatpush1.msra.mxu0 0.0
      %451 = vmatprep.subr.mxu0 0.0
      %452 = vmatpush1.msra.mxu0 0.0
      %453 = vmatprep.subr.mxu0 0.0
      %454 = vmatpush1.msra.mxu0 0.0
      %455 = vmatprep.subr.mxu0 0.0
      %456 = vmatpush1.msra.mxu0 0.0
      %457 = vmatprep.mubr.f32.mxu0 0.0
      %458 = vmatmul.mubr.f32.gmra.mrb[0].mxu0 %v388
      %v459 = vpop.f32.mrb[0].mxu0
      %v460 = vadd.f32 0.0, %v459
      %v461 = vpop.f32.mrb[0].mxu0
      %462 = vmatprep.mubr.f32.mxu0 0.0
      %463 = vmatmul.mubr.f32.gmra.mrb[0].mxu0 %v391
      %v464 = vpop.f32.mrb[0].mxu0
      %v465 = vadd.f32 0.0, %v464
      %v466 = vpop.f32.mrb[0].mxu0
      %467 = vdwg.mxu0
      %v469 = vlaneseq
      %v470 = vshrl.u32 %v469, 7
      %v471 = vsub.s32 0, %v470
      %v472 = vrot.slane %v385, %v471
      %vm474 = vcmask 64512
      %v476 = vsel %vm474, %v460, 0
      %v479 = vsel %vm474, %v465, 0
      %481 = vmatprep.subr.mxu0 0.0
      %482 = vmatpush1.msra.mxu0 %v384
      %483 = vmatprep.subr.mxu0 0.0
      %484 = vmatpush1.msra.mxu0 0.0
      %485 = vmatprep.subr.mxu0 0.0
      %486 = vmatpush1.msra.mxu0 0.0
      %487 = vmatprep.subr.mxu0 0.0
      %488 = vmatpush1.msra.mxu0 0.0
      %489 = vmatprep.subr.mxu0 0.0
      %490 = vmatpush1.msra.mxu0 0.0
      %491 = vmatprep.subr.mxu0 0.0
      %492 = vmatpush1.msra.mxu0 0.0
      %493 = vmatprep.subr.mxu0 0.0
      %494 = vmatpush1.msra.mxu0 0.0
      %495 = vmatprep.subr.mxu0 0.0
      %496 = vmatpush1.msra.mxu0 0.0
      %497 = vmatprep.subr.mxu0 0.0
      %498 = vmatpush1.msra.mxu0 0.0
      %499 = vmatprep.subr.mxu0 0.0
      %500 = vmatpush1.msra.mxu0 0.0
      %501 = vmatprep.subr.mxu0 0.0
      %502 = vmatpush1.msra.mxu0 0.0
      %503 = vmatprep.subr.mxu0 0.0
      %504 = vmatpush1.msra.mxu0 0.0
      %505 = vmatprep.subr.mxu0 0.0
      %506 = vmatpush1.msra.mxu0 0.0
      %507 = vmatprep.subr.mxu0 0.0
      %508 = vmatpush1.msra.mxu0 0.0
      %509 = vmatprep.subr.mxu0 0.0
      %510 = vmatpush1.msra.mxu0 0.0
      %511 = vmatprep.subr.mxu0 0.0
      %512 = vmatpush1.msra.mxu0 0.0
      %513 = vmatprep.subr.mxu0 0.0
      %514 = vmatpush1.msra.mxu0 0.0
      %515 = vmatprep.subr.mxu0 0.0
      %516 = vmatpush1.msra.mxu0 0.0
      %517 = vmatprep.subr.mxu0 0.0
      %518 = vmatpush1.msra.mxu0 0.0
      %519 = vmatprep.subr.mxu0 0.0
      %520 = vmatpush1.msra.mxu0 0.0
      %521 = vmatprep.subr.mxu0 0.0
      %522 = vmatpush1.msra.mxu0 0.0
      %523 = vmatprep.subr.mxu0 0.0
      %524 = vmatpush1.msra.mxu0 0.0
      %525 = vmatprep.subr.mxu0 0.0
      %526 = vmatpush1.msra.mxu0 0.0
      %527 = vmatprep.subr.mxu0 0.0
      %528 = vmatpush1.msra.mxu0 0.0
      %529 = vmatprep.subr.mxu0 0.0
      %530 = vmatpush1.msra.mxu0 0.0
      %531 = vmatprep.subr.mxu0 0.0
      %532 = vmatpush1.msra.mxu0 0.0
      %533 = vmatprep.subr.mxu0 0.0
      %534 = vmatpush1.msra.mxu0 0.0
      %535 = vmatprep.subr.mxu0 0.0
      %536 = vmatpush1.msra.mxu0 0.0
      %537 = vmatprep.subr.mxu0 0.0
      %538 = vmatpush1.msra.mxu0 0.0
      %539 = vmatprep.subr.mxu0 0.0
      %540 = vmatpush1.msra.mxu0 0.0
      %541 = vmatprep.subr.mxu0 0.0
      %542 = vmatpush1.msra.mxu0 0.0
      %543 = vmatprep.subr.mxu0 0.0
      %544 = vmatpush1.msra.mxu0 0.0
      %545 = vmatprep.mubr.f32.mxu0 0.0
      %546 = vmatmul.mubr.f32.gmra.mrb[0].mxu0 %v476
      %v547 = vpop.f32.mrb[0].mxu0
      %v548 = vadd.f32 %v472, %v547
      %v549 = vpop.f32.mrb[0].mxu0
      %550 = vmatprep.mubr.f32.mxu0 0.0
      %551 = vmatmul.mubr.f32.gmra.mrb[0].mxu0 %v479
      %v552 = vpop.f32.mrb[0].mxu0
      %v553 = vadd.f32 %v472, %v552
      %v554 = vpop.f32.mrb[0].mxu0
      %555 = vdwg.mxu0
      %v556 = vmax.f32 %v548, 0.0
      %v557 = vmax.f32 %v553, 0.0
      %v558 = vmul.f32 %v548, %v548
      %v559 = vmul.f32 %v553, %v553
      %v560 = vadd.f32 %v558, 1.0
      %v561 = vadd.f32 %v559, 1.0
      %v562 = vrcp.pop %v560
      %v563 = vrcp.pop %v561
      %v564 = vmul.f32 %v562, 2.0
      %v565 = vmul.f32 %v563, 2.0
      %v566 = vsub.f32 %v556, %v564
      %v567 = vsub.f32 %v557, %v565
      %v568 = vld [vmem:[%s4] sm:$0xff]
      %v569 = vld [vmem:[%s4 + $0x8] sm:$0xff]
      %v570 = vld [vmem:[%s4 + $0x10] sm:$0xff]
      %v571 = vld [vmem:[%s4 + $0x18] sm:$0xff]
      %v572 = vld [vmem:[%s5] sm:$0x1]
      %573 = vmatprep.subr.mxu0 0.0
      %574 = vmatpush1.msra.mxu0 %v566
      %575 = vmatprep.subr.mxu0 0.0
      %576 = vmatpush1.msra.mxu0 %v567
      %577 = vmatprep.subr.mxu0 0.0
      %578 = vmatpush1.msra.mxu0 0.0
      %579 = vmatprep.subr.mxu0 0.0
      %580 = vmatpush1.msra.mxu0 0.0
      %581 = vmatprep.subr.mxu0 0.0
      %582 = vmatpush1.msra.mxu0 0.0
      %583 = vmatprep.subr.mxu0 0.0
      %584 = vmatpush1.msra.mxu0 0.0
      %585 = vmatprep.subr.mxu0 0.0
      %586 = vmatpush1.msra.mxu0 0.0
      %587 = vmatprep.subr.mxu0 0.0
      %588 = vmatpush1.msra.mxu0 0.0
      %589 = vmatprep.subr.mxu0 0.0
      %590 = vmatpush1.msra.mxu0 0.0
      %591 = vmatprep.subr.mxu0 0.0
      %592 = vmatpush1.msra.mxu0 0.0
      %593 = vmatprep.subr.mxu0 0.0
      %594 = vmatpush1.msra.mxu0 0.0
      %595 = vmatprep.subr.mxu0 0.0
      %596 = vmatpush1.msra.mxu0 0.0
      %597 = vmatprep.subr.mxu0 0.0
      %598 = vmatpush1.msra.mxu0 0.0
      %599 = vmatprep.subr.mxu0 0.0
      %600 = vmatpush1.msra.mxu0 0.0
      %601 = vmatprep.subr.mxu0 0.0
      %602 = vmatpush1.msra.mxu0 0.0
      %603 = vmatprep.subr.mxu0 0.0
      %604 = vmatpush1.msra.mxu0 0.0
      %605 = vmatprep.subr.mxu0 0.0
      %606 = vmatpush1.msra.mxu0 0.0
      %607 = vmatprep.subr.mxu0 0.0
      %608 = vmatpush1.msra.mxu0 0.0
      %609 = vmatprep.subr.mxu0 0.0
      %610 = vmatpush1.msra.mxu0 0.0
      %611 = vmatprep.subr.mxu0 0.0
      %612 = vmatpush1.msra.mxu0 0.0
      %613 = vmatprep.subr.mxu0 0.0
      %614 = vmatpush1.msra.mxu0 0.0
      %615 = vmatprep.subr.mxu0 0.0
      %616 = vmatpush1.msra.mxu0 0.0
      %617 = vmatprep.subr.mxu0 0.0
      %618 = vmatpush1.msra.mxu0 0.0
      %619 = vmatprep.subr.mxu0 0.0
      %620 = vmatpush1.msra.mxu0 0.0
      %621 = vmatprep.subr.mxu0 0.0
      %622 = vmatpush1.msra.mxu0 0.0
      %623 = vmatprep.subr.mxu0 0.0
      %624 = vmatpush1.msra.mxu0 0.0
      %625 = vmatprep.subr.mxu0 0.0
      %626 = vmatpush1.msra.mxu0 0.0
      %627 = vmatprep.subr.mxu0 0.0
      %628 = vmatpush1.msra.mxu0 0.0
      %629 = vmatprep.subr.mxu0 0.0
      %630 = vmatpush1.msra.mxu0 0.0
      %631 = vmatprep.subr.mxu0 0.0
      %632 = vmatpush1.msra.mxu0 0.0
      %633 = vmatprep.subr.mxu0 0.0
      %634 = vmatpush1.msra.mxu0 0.0
      %635 = vmatprep.subr.mxu0 0.0
      %636 = vmatpush1.msra.mxu0 0.0
      %637 = vmatprep.mubr.f32.mxu0 0.0
      %638 = vmatmul.mubr.f32.gmra.mrb[0].mxu0 %v388
      %v639 = vpop.f32.mrb[0].mxu0
      %v640 = vadd.f32 0.0, %v639
      %v641 = vpop.f32.mrb[0].mxu0
      %642 = vmatprep.mubr.f32.mxu0 0.0
      %643 = vmatmul.mubr.f32.gmra.mrb[0].mxu0 %v391
      %v644 = vpop.f32.mrb[0].mxu0
      %v645 = vadd.f32 0.0, %v644
      %v646 = vpop.f32.mrb[0].mxu0
      %647 = vdwg.mxu0
      %v649 = vlaneseq
      %v650 = vshrl.u32 %v649, 7
      %v651 = vsub.s32 0, %v650
      %v652 = vrot.slane %v572, %v651
      %vm654 = vcmask 261120
      %v656 = vsel %vm654, %v640, 0
      %v659 = vsel %vm654, %v645, 0
      %661 = vmatprep.subr.mxu0 0.0
      %662 = vmatpush1.msra.mxu0 %v568
      %663 = vmatprep.subr.mxu0 0.0
      %664 = vmatpush1.msra.mxu0 %v569
      %665 = vmatprep.subr.mxu0 0.0
      %666 = vmatpush1.msra.mxu0 %v570
      %667 = vmatprep.subr.mxu0 0.0
      %668 = vmatpush1.msra.mxu0 %v571
      %669 = vmatprep.subr.mxu0 0.0
      %670 = vmatpush1.msra.mxu0 0.0
      %671 = vmatprep.subr.mxu0 0.0
      %672 = vmatpush1.msra.mxu0 0.0
      %673 = vmatprep.subr.mxu0 0.0
      %674 = vmatpush1.msra.mxu0 0.0
      %675 = vmatprep.subr.mxu0 0.0
      %676 = vmatpush1.msra.mxu0 0.0
      %677 = vmatprep.subr.mxu0 0.0
      %678 = vmatpush1.msra.mxu0 0.0
      %679 = vmatprep.subr.mxu0 0.0
      %680 = vmatpush1.msra.mxu0 0.0
      %681 = vmatprep.subr.mxu0 0.0
      %682 = vmatpush1.msra.mxu0 0.0
      %683 = vmatprep.subr.mxu0 0.0
      %684 = vmatpush1.msra.mxu0 0.0
      %685 = vmatprep.subr.mxu0 0.0
      %686 = vmatpush1.msra.mxu0 0.0
      %687 = vmatprep.subr.mxu0 0.0
      %688 = vmatpush1.msra.mxu0 0.0
      %689 = vmatprep.subr.mxu0 0.0
      %690 = vmatpush1.msra.mxu0 0.0
      %691 = vmatprep.subr.mxu0 0.0
      %692 = vmatpush1.msra.mxu0 0.0
      %693 = vmatprep.subr.mxu0 0.0
      %694 = vmatpush1.msra.mxu0 0.0
      %695 = vmatprep.subr.mxu0 0.0
      %696 = vmatpush1.msra.mxu0 0.0
      %697 = vmatprep.subr.mxu0 0.0
      %698 = vmatpush1.msra.mxu0 0.0
      %699 = vmatprep.subr.mxu0 0.0
      %700 = vmatpush1.msra.mxu0 0.0
      %701 = vmatprep.subr.mxu0 0.0
      %702 = vmatpush1.msra.mxu0 0.0
      %703 = vmatprep.subr.mxu0 0.0
      %704 = vmatpush1.msra.mxu0 0.0
      %705 = vmatprep.subr.mxu0 0.0
      %706 = vmatpush1.msra.mxu0 0.0
      %707 = vmatprep.subr.mxu0 0.0
      %708 = vmatpush1.msra.mxu0 0.0
      %709 = vmatprep.subr.mxu0 0.0
      %710 = vmatpush1.msra.mxu0 0.0
      %711 = vmatprep.subr.mxu0 0.0
      %712 = vmatpush1.msra.mxu0 0.0
      %713 = vmatprep.subr.mxu0 0.0
      %714 = vmatpush1.msra.mxu0 0.0
      %715 = vmatprep.subr.mxu0 0.0
      %716 = vmatpush1.msra.mxu0 0.0
      %717 = vmatprep.subr.mxu0 0.0
      %718 = vmatpush1.msra.mxu0 0.0
      %719 = vmatprep.subr.mxu0 0.0
      %720 = vmatpush1.msra.mxu0 0.0
      %721 = vmatprep.subr.mxu0 0.0
      %722 = vmatpush1.msra.mxu0 0.0
      %723 = vmatprep.subr.mxu0 0.0
      %724 = vmatpush1.msra.mxu0 0.0
      %725 = vmatprep.mubr.f32.mxu0 0.0
      %726 = vmatmul.mubr.f32.gmra.mrb[0].mxu0 %v656
      %v727 = vpop.f32.mrb[0].mxu0
      %v728 = vadd.f32 %v652, %v727
      %v729 = vpop.f32.mrb[0].mxu0
      %730 = vmatprep.mubr.f32.mxu0 0.0
      %731 = vmatmul.mubr.f32.gmra.mrb[0].mxu0 %v659
      %v732 = vpop.f32.mrb[0].mxu0
      %v733 = vadd.f32 %v652, %v732
      %v734 = vpop.f32.mrb[0].mxu0
      %735 = vdwg.mxu0
      %v736 = vmax.f32 %v728, 0.0
      %v737 = vmax.f32 %v733, 0.0
      %v738 = vmul.f32 %v728, %v728
      %v739 = vmul.f32 %v733, %v733
      %v740 = vadd.f32 %v738, 1.0
      %v741 = vadd.f32 %v739, 1.0
      %v742 = vrcp.pop %v740
      %v743 = vrcp.pop %v741
      %v744 = vmul.f32 %v742, 2.0
      %v745 = vmul.f32 %v743, 2.0
      %v746 = vsub.f32 %v736, %v744
      %v747 = vsub.f32 %v737, %v745
      %v748 = vld [vmem:[%s6] sm:$0x1]
      %v750 = vlaneseq
      %v751 = vshrl.u32 %v750, 7
      %v752 = vsub.s32 0, %v751
      %v753 = vrot.slane %v748, %v752
      %v755 = vmul.f32 %v746, %v753
      %v756 = vmul.f32 %v747, %v753
      %v757 = vsel %vm386, %v755, 0.0
      %758 = vadd.xlane.f32.xlu0 %v757
      %v759 = vpop.xlane.xlu0 %758
      %v760 = vsel %vm386, %v756, 0.0
      %761 = vadd.xlane.f32.xlu0 %v760
      %v762 = vpop.xlane.xlu0 %761
      %v763 = vld [vmem:[#allocation2] sm:$0x1]
      %765 = vset.pattern.permute.xlu0 0
      %766 = vperm.xlu0 %765, %v763
      %v767 = vpop.permute.xlu0 %766
      %v769 = vlaneseq
      %v770 = vshrl.u32 %v769, 7
      %v771 = vsub.s32 0, %v770
      %v772 = vrot.slane %v767, %v771
      %v775 = vlaneseq
      %v776 = vand.u32 %v775, 127
      %v777 = vlaneseq
      %v778 = vshrl.u32 %v777, 7
      %v779 = vsub.s32 %v776, %v778
      %v780 = vrot.slane %v759, %v779
      %v781 = vadd.s32 %v776, 4294967288
      %v782 = vlaneseq
      %v783 = vshrl.u32 %v782, 7
      %v784 = vsub.s32 %v781, %v783
      %v785 = vrot.slane %v762, %v784
      %vm786 = vcmask 130112
      %v787 = vsel %vm786, %v785, %v780
      %v788 = vsel %vm386, %v787, 0
      %790 = vmatprep.subr.mxu0 0.0
      %791 = vmatpush1.msra.mxu0 %v380
      %792 = vmatprep.subr.mxu0 0.0
      %793 = vmatpush1.msra.mxu0 %v381
      %794 = vmatprep.subr.mxu0 0.0
      %795 = vmatpush1.msra.mxu0 0.0
      %796 = vmatprep.subr.mxu0 0.0
      %797 = vmatpush1.msra.mxu0 0.0
      %798 = vmatprep.subr.mxu0 0.0
      %799 = vmatpush1.msra.mxu0 0.0
      %800 = vmatprep.subr.mxu0 0.0
      %801 = vmatpush1.msra.mxu0 0.0
      %802 = vmatprep.subr.mxu0 0.0
      %803 = vmatpush1.msra.mxu0 0.0
      %804 = vmatprep.subr.mxu0 0.0
      %805 = vmatpush1.msra.mxu0 0.0
      %806 = vmatprep.subr.mxu0 0.0
      %807 = vmatpush1.msra.mxu0 0.0
      %808 = vmatprep.subr.mxu0 0.0
      %809 = vmatpush1.msra.mxu0 0.0
      %810 = vmatprep.subr.mxu0 0.0
      %811 = vmatpush1.msra.mxu0 0.0
      %812 = vmatprep.subr.mxu0 0.0
      %813 = vmatpush1.msra.mxu0 0.0
      %814 = vmatprep.subr.mxu0 0.0
      %815 = vmatpush1.msra.mxu0 0.0
      %816 = vmatprep.subr.mxu0 0.0
      %817 = vmatpush1.msra.mxu0 0.0
      %818 = vmatprep.subr.mxu0 0.0
      %819 = vmatpush1.msra.mxu0 0.0
      %820 = vmatprep.subr.mxu0 0.0
      %821 = vmatpush1.msra.mxu0 0.0
      %822 = vmatprep.subr.mxu0 0.0
      %823 = vmatpush1.msra.mxu0 0.0
      %824 = vmatprep.subr.mxu0 0.0
      %825 = vmatpush1.msra.mxu0 0.0
      %826 = vmatprep.subr.mxu0 0.0
      %827 = vmatpush1.msra.mxu0 0.0
      %828 = vmatprep.subr.mxu0 0.0
      %829 = vmatpush1.msra.mxu0 0.0
      %830 = vmatprep.subr.mxu0 0.0
      %831 = vmatpush1.msra.mxu0 0.0
      %832 = vmatprep.subr.mxu0 0.0
      %833 = vmatpush1.msra.mxu0 0.0
      %834 = vmatprep.subr.mxu0 0.0
      %835 = vmatpush1.msra.mxu0 0.0
      %836 = vmatprep.subr.mxu0 0.0
      %837 = vmatpush1.msra.mxu0 0.0
      %838 = vmatprep.subr.mxu0 0.0
      %839 = vmatpush1.msra.mxu0 0.0
      %840 = vmatprep.subr.mxu0 0.0
      %841 = vmatpush1.msra.mxu0 0.0
      %842 = vmatprep.subr.mxu0 0.0
      %843 = vmatpush1.msra.mxu0 0.0
      %844 = vmatprep.subr.mxu0 0.0
      %845 = vmatpush1.msra.mxu0 0.0
      %846 = vmatprep.subr.mxu0 0.0
      %847 = vmatpush1.msra.mxu0 0.0
      %848 = vmatprep.subr.mxu0 0.0
      %849 = vmatpush1.msra.mxu0 0.0
      %850 = vmatprep.subr.mxu0 0.0
      %851 = vmatpush1.msra.mxu0 0.0
      %852 = vmatprep.subr.mxu0 0.0
      %853 = vmatpush1.msra.mxu0 0.0
      %854 = vmatprep.mubr.f32.mxu0 0.0
      %855 = vmatmul.mubr.f32.gmra.mrb[0].mxu0 %v788
      %v856 = vpop.f32.mrb[0].mxu0
      %v857 = vadd.f32 %v772, %v856
      %v858 = vpop.f32.mrb[0].mxu0
      %859 = vdwg.mxu0
      %v861 = vsel %vm386, %v857, 0
      %863 = vmatprep.subr.mxu0 0.0
      %864 = vmatpush1.msra.mxu0 %v382
      %865 = vmatprep.subr.mxu0 0.0
      %866 = vmatpush1.msra.mxu0 %v383
      %867 = vmatprep.subr.mxu0 0.0
      %868 = vmatpush1.msra.mxu0 0.0
      %869 = vmatprep.subr.mxu0 0.0
      %870 = vmatpush1.msra.mxu0 0.0
      %871 = vmatprep.subr.mxu0 0.0
      %872 = vmatpush1.msra.mxu0 0.0
      %873 = vmatprep.subr.mxu0 0.0
      %874 = vmatpush1.msra.mxu0 0.0
      %875 = vmatprep.subr.mxu0 0.0
      %876 = vmatpush1.msra.mxu0 0.0
      %877 = vmatprep.subr.mxu0 0.0
      %878 = vmatpush1.msra.mxu0 0.0
      %879 = vmatprep.subr.mxu0 0.0
      %880 = vmatpush1.msra.mxu0 0.0
      %881 = vmatprep.subr.mxu0 0.0
      %882 = vmatpush1.msra.mxu0 0.0
      %883 = vmatprep.subr.mxu0 0.0
      %884 = vmatpush1.msra.mxu0 0.0
      %885 = vmatprep.subr.mxu0 0.0
      %886 = vmatpush1.msra.mxu0 0.0
      %887 = vmatprep.subr.mxu0 0.0
      %888 = vmatpush1.msra.mxu0 0.0
      %889 = vmatprep.subr.mxu0 0.0
      %890 = vmatpush1.msra.mxu0 0.0
      %891 = vmatprep.subr.mxu0 0.0
      %892 = vmatpush1.msra.mxu0 0.0
      %893 = vmatprep.subr.mxu0 0.0
      %894 = vmatpush1.msra.mxu0 0.0
      %895 = vmatprep.subr.mxu0 0.0
      %896 = vmatpush1.msra.mxu0 0.0
      %897 = vmatprep.subr.mxu0 0.0
      %898 = vmatpush1.msra.mxu0 0.0
      %899 = vmatprep.subr.mxu0 0.0
      %900 = vmatpush1.msra.mxu0 0.0
      %901 = vmatprep.subr.mxu0 0.0
      %902 = vmatpush1.msra.mxu0 0.0
      %903 = vmatprep.subr.mxu0 0.0
      %904 = vmatpush1.msra.mxu0 0.0
      %905 = vmatprep.subr.mxu0 0.0
      %906 = vmatpush1.msra.mxu0 0.0
      %907 = vmatprep.subr.mxu0 0.0
      %908 = vmatpush1.msra.mxu0 0.0
      %909 = vmatprep.subr.mxu0 0.0
      %910 = vmatpush1.msra.mxu0 0.0
      %911 = vmatprep.subr.mxu0 0.0
      %912 = vmatpush1.msra.mxu0 0.0
      %913 = vmatprep.subr.mxu0 0.0
      %914 = vmatpush1.msra.mxu0 0.0
      %915 = vmatprep.subr.mxu0 0.0
      %916 = vmatpush1.msra.mxu0 0.0
      %917 = vmatprep.subr.mxu0 0.0
      %918 = vmatpush1.msra.mxu0 0.0
      %919 = vmatprep.subr.mxu0 0.0
      %920 = vmatpush1.msra.mxu0 0.0
      %921 = vmatprep.subr.mxu0 0.0
      %922 = vmatpush1.msra.mxu0 0.0
      %923 = vmatprep.subr.mxu0 0.0
      %924 = vmatpush1.msra.mxu0 0.0
      %925 = vmatprep.subr.mxu0 0.0
      %926 = vmatpush1.msra.mxu0 0.0
      %927 = vmatprep.mubr.f32.mxu0 0.0
      %928 = vmatmul.mubr.f32.gmra.mrb[0].mxu0 %v861
      %v929 = vpop.f32.mrb[0].mxu0
      %v930 = vadd.f32 0.0, %v929
      %v931 = vpop.f32.mrb[0].mxu0
      %932 = vdwg.mxu0
      %v933 = vld [vmem:[%s8] sm:$0xff]
      %v934 = vld [vmem:[#allocation3] sm:$0x1]
      %v936 = vsel %vm474, %v930, 0
      %938 = vmatprep.subr.mxu0 0.0
      %939 = vmatpush1.msra.mxu0 %v933
      %940 = vmatprep.subr.mxu0 0.0
      %941 = vmatpush1.msra.mxu0 0.0
      %942 = vmatprep.subr.mxu0 0.0
      %943 = vmatpush1.msra.mxu0 0.0
      %944 = vmatprep.subr.mxu0 0.0
      %945 = vmatpush1.msra.mxu0 0.0
      %946 = vmatprep.subr.mxu0 0.0
      %947 = vmatpush1.msra.mxu0 0.0
      %948 = vmatprep.subr.mxu0 0.0
      %949 = vmatpush1.msra.mxu0 0.0
      %950 = vmatprep.subr.mxu0 0.0
      %951 = vmatpush1.msra.mxu0 0.0
      %952 = vmatprep.subr.mxu0 0.0
      %953 = vmatpush1.msra.mxu0 0.0
      %954 = vmatprep.subr.mxu0 0.0
      %955 = vmatpush1.msra.mxu0 0.0
      %956 = vmatprep.subr.mxu0 0.0
      %957 = vmatpush1.msra.mxu0 0.0
      %958 = vmatprep.subr.mxu0 0.0
      %959 = vmatpush1.msra.mxu0 0.0
      %960 = vmatprep.subr.mxu0 0.0
      %961 = vmatpush1.msra.mxu0 0.0
      %962 = vmatprep.subr.mxu0 0.0
      %963 = vmatpush1.msra.mxu0 0.0
      %964 = vmatprep.subr.mxu0 0.0
      %965 = vmatpush1.msra.mxu0 0.0
      %966 = vmatprep.subr.mxu0 0.0
      %967 = vmatpush1.msra.mxu0 0.0
      %968 = vmatprep.subr.mxu0 0.0
      %969 = vmatpush1.msra.mxu0 0.0
      %970 = vmatprep.subr.mxu0 0.0
      %971 = vmatpush1.msra.mxu0 0.0
      %972 = vmatprep.subr.mxu0 0.0
      %973 = vmatpush1.msra.mxu0 0.0
      %974 = vmatprep.subr.mxu0 0.0
      %975 = vmatpush1.msra.mxu0 0.0
      %976 = vmatprep.subr.mxu0 0.0
      %977 = vmatpush1.msra.mxu0 0.0
      %978 = vmatprep.subr.mxu0 0.0
      %979 = vmatpush1.msra.mxu0 0.0
      %980 = vmatprep.subr.mxu0 0.0
      %981 = vmatpush1.msra.mxu0 0.0
      %982 = vmatprep.subr.mxu0 0.0
      %983 = vmatpush1.msra.mxu0 0.0
      %984 = vmatprep.subr.mxu0 0.0
      %985 = vmatpush1.msra.mxu0 0.0
      %986 = vmatprep.subr.mxu0 0.0
      %987 = vmatpush1.msra.mxu0 0.0
      %988 = vmatprep.subr.mxu0 0.0
      %989 = vmatpush1.msra.mxu0 0.0
      %990 = vmatprep.subr.mxu0 0.0
      %991 = vmatpush1.msra.mxu0 0.0
      %992 = vmatprep.subr.mxu0 0.0
      %993 = vmatpush1.msra.mxu0 0.0
      %994 = vmatprep.subr.mxu0 0.0
      %995 = vmatpush1.msra.mxu0 0.0
      %996 = vmatprep.subr.mxu0 0.0
      %997 = vmatpush1.msra.mxu0 0.0
      %998 = vmatprep.subr.mxu0 0.0
      %999 = vmatpush1.msra.mxu0 0.0
      %1000 = vmatprep.subr.mxu0 0.0
      %1001 = vmatpush1.msra.mxu0 0.0
      %1002 = vmatprep.mubr.f32.mxu0 0.0
      %1003 = vmatmul.mubr.f32.gmra.mrb[0].mxu0 %v936
      %v1004 = vpop.f32.mrb[0].mxu0
      %v1005 = vadd.f32 %v934, %v1004
      %v1006 = vpop.f32.mrb[0].mxu0
      %1007 = vdwg.mxu0
      %vm1008 = vcmask 0
      %1009 = vst.msk [vmem:[%s379] sm:$0x1] %vm1008, %v1005
      %p1010 = scmp.lt.s32.totalorder %s25, 1
      %s1011 = scalar_select %p1010, %s25, 1
      %s1012 = scalar_lea.vmem %s10, %s1011
      // Predicated region
      $region61: #{tpu_custom_call.1} parent=59 // pred_check
        %p1013 = pneg %p263
      $region62: #{tpu_custom_call.1} parent=59 // pred_check_branch
        %1015 = sbr.rel (%p1013) target = $region64
      $region63: #{tpu_custom_call.1} parent=59 // pred_region
        _
      $region64: #{tpu_custom_call.1} parent=59 // pred_fallthru
        _
    $region60: #{tpu_custom_call.1} parent=5 // pred_fallthru
      _
    %p1016 = scmp.le.s32.totalorder 2, %s20
    // Predicated region
    $region65: #{tpu_custom_call.1} parent=5 // pred_check
      %p1017 = pneg %p1016
    $region66: #{tpu_custom_call.1} parent=5 // pred_check_branch
      %1019 = sbr.rel (%p1017) target = $region68
    $region67: #{tpu_custom_call.1} parent=5 // pred_region
      %s1020 = ssub.s32 %s20, 2
      // Predicated region
      $region69: #{tpu_custom_call.1} parent=67 // pred_check
        %p1021 = pneg %p269
      $region70: #{tpu_custom_call.1} parent=67 // pred_check_branch
        %1023 = sbr.rel (%p1021) target = $region72
      $region71: #{tpu_custom_call.1} parent=67 // pred_region
        %p1024 = scmp.lt.s32.totalorder %s26, 1
        %s1025 = scalar_select %p1024, %s26, 1
        %s1026 = scalar_lea.vmem %s10, %s1025
      $region72: #{tpu_custom_call.1} parent=67 // pred_fallthru
        _
    $region68: #{tpu_custom_call.1} parent=5 // pred_fallthru
      _
  $region6: #{tpu_custom_call.1} parent=0 // loop_footer
    %s24 = sadd.s32 1, %s20
  $region7: #{tpu_custom_call.1} parent=0 // loop_footer_branch
    %19 = sbr.rel target = $region3
  $region8: #{tpu_custom_call.1} parent=0 // loop_exit
    _

</llo_original>
